<compile_context>
chip_gen: v7x
topology: tpu7x:2x2x1
jax: 0.10.0
libtpu: 0.0.40
codegen_flags: <defaults>
</compile_context>

<pallas_src>
import math

import numpy as np
import jax
import jax.numpy as jnp
from jax.experimental import pallas as pl
from jax.experimental.pallas import tpu as pltpu

LANES = 128


# ----------------------------------------------------------------------------
# Diffusion schedule buffers (same math as the PyTorch __init__, float64 -> f32)
# ----------------------------------------------------------------------------
def build_schedule(timesteps, p2_loss_weight_gamma=0.0, p2_loss_weight_k=1.0):
    # linear_beta_schedule
    scale = 1000.0 / timesteps
    betas = np.linspace(scale * 1e-4, scale * 0.02, timesteps, dtype=np.float64)
    alphas = 1.0 - betas
    alphas_cumprod = np.cumprod(alphas)
    sched = {
        "sqrt_alphas_cumprod": np.sqrt(alphas_cumprod),
        "sqrt_one_minus_alphas_cumprod": np.sqrt(1.0 - alphas_cumprod),
        "p2_loss_weight": (p2_loss_weight_k + alphas_cumprod / (1.0 - alphas_cumprod))
        ** (-p2_loss_weight_gamma),
    }
    return {k: jnp.asarray(v, dtype=jnp.float32) for k, v in sched.items()}


# ----------------------------------------------------------------------------
# Pallas kernel: normalize + q_sample + denoiser + L1 + lane-resident reduce.
#   grid = (n_split, nt): axis 0 "parallel" (N halves for v7x's 2 TCs),
#                         axis 1 "arbitrary" (seq-tile accumulation).
#   Batch is folded into the block: everything is (B*C, tile_n).
#   Output block (B*C, 128) per split is the resident lane-partial accumulator.
# ----------------------------------------------------------------------------
def diffusion_loss_kernel(img_ref, noise_ref, w_ref, coef_ref, loss_ref):
    j = pl.program_id(1)

    @pl.when(j == 0)
    def _():
        loss_ref[...] = jnp.zeros_like(loss_ref)

    img = img_ref[...]                       # (B*C, tile_n), native layout view
    noise = noise_ref[...]                   # (B*C, tile_n)
    sac = coef_ref[0]                        # (B*C, 1)  sqrt(alphas_cumprod)[t_b]
    som = coef_ref[1]                        # (B*C, 1)  sqrt(1 - alphas_cumprod)[t_b]
    bias_t = coef_ref[2]                     # (B*C, 1)  conv bias + t_b/T conditioning

    # normalize_to_neg_one_to_one + q_sample
    x = sac * (img * 2.0 - 1.0) + som * noise

    # synthetic denoiser (stand-in for Unet1D): pointwise Conv1d == channel-mix
    # matmul on the MXU; block-diagonal weight mixes channels within each batch.
    y = jnp.dot(w_ref[...], x, preferred_element_type=jnp.float32) + bias_t

    # objective == 'pred_noise' -> target = noise ; loss_type == 'l1'
    err = jnp.abs(y - noise)                 # (B*C, tile_n)

    # lane-resident partial sum: aligned 128-lane slices + VPU adds only
    # (no per-tile XLU cross-lane reduce, no (1,1) broadcast).
    tn = err.shape[-1]
    part = err[:, 0:LANES]
    for k in range(1, tn // LANES):
        part = part + err[:, k * LANES:(k + 1) * LANES]
    loss_ref[...] += part                    # (B*C, 128) accumulator


# ----------------------------------------------------------------------------
# Tiling helpers
# ----------------------------------------------------------------------------
def _pick_n_split(n):
    # v7x has 2 TensorCores/chip -> give each a parallel slice of N.
    # Single-TC chips (v5e/v6e): collapse (the extra axis is pure step overhead).
    try:
        kind = jax.devices()[0].device_kind.lower()
    except Exception:
        kind = ""
    if "v7" in kind and n % (2 * LANES) == 0:
        return 2
    return 1


def _pick_tile_n(n_per_split, bc, max_tile=8192,
                 vmem_budget=32 * 1024 * 1024):
    # Coarse tiles: big slabs per grid step; budget double-buffered inputs
    # against v7x's smaller scoped VMEM (2 inputs x 2 buffers x bc x t x 4B).
    t = min(max_tile, n_per_split)
    t = (t // LANES) * LANES
    while t > LANES and (n_per_split % t != 0 or 16 * bc * t > vmem_budget // 2):
        t -= LANES
    assert t >= LANES and t % LANES == 0 and n_per_split % t == 0, \
        "seq length must be a multiple of 128"
    return t


# ----------------------------------------------------------------------------
# Wrapper: coefficient prep + pallas_call (no HBM copies of img / noise:
# the (B, C, N) -> (B*C, N) reshape is a pure view of the native layout).
# ----------------------------------------------------------------------------
def gaussian_diffusion_1d_forward(img, t, noise, schedule, model_w, model_b,
                                  num_timesteps, tile_n=None, n_split=None):
    B, C, N = img.shape
    assert N % LANES == 0, "seq length must be a multiple of 128"
    BC = B * C

    n_split = _pick_n_split(N) if n_split is None else n_split
    n_per_split = N // n_split
    tile_n = _pick_tile_n(n_per_split, BC) if tile_n is None else tile_n
    assert n_per_split % tile_n == 0 and tile_n % LANES == 0
    nt = n_per_split // tile_n

    # free view reshape (contiguous): batch folded into the sublane dim
    img2 = img.reshape(BC, N)
    noise2 = noise.reshape(BC, N)

    # block-diagonal channel-mix weight: one matmul covers the whole batch
    w_bd = jnp.kron(jnp.eye(B, dtype=model_w.dtype), model_w)          # (BC, BC)

    # per-sample coefficients expanded to per-row vectors (tiny VMEM input)
    sac_t = schedule["sqrt_alphas_cumprod"][t]                          # (B,)
    som_t = schedule["sqrt_one_minus_alphas_cumprod"][t]                # (B,)
    temb_t = t.astype(jnp.float32) / float(num_timesteps)               # (B,) synthetic time cond
    p2w_t = schedule["p2_loss_weight"][t]                               # (B,)

    sac_rows = jnp.repeat(sac_t, C)                                     # (BC,)
    som_rows = jnp.repeat(som_t, C)                                     # (BC,)
    bias_rows = jnp.tile(model_b, (B,)) + jnp.repeat(temb_t, C)         # bias + temb pre-folded
    coefs = jnp.stack([sac_rows, som_rows, bias_rows]).reshape(3, BC, 1)

    out = pl.pallas_call(
        diffusion_loss_kernel,
        out_shape=jax.ShapeDtypeStruct((n_split, BC, LANES), jnp.float32),
        grid_spec=pltpu.PrefetchScalarGridSpec(
            num_scalar_prefetch=0,
            grid=(n_split, nt),
            in_specs=[
                # native-layout (B*C, N) slabs, lane-tiled; double-buffered
                pl.BlockSpec((BC, tile_n), lambda p, j, nt=nt: (0, p * nt + j)),
                pl.BlockSpec((BC, tile_n), lambda p, j, nt=nt: (0, p * nt + j)),
                # small resident model params / coefficients
                pl.BlockSpec((BC, BC), lambda p, j: (0, 0)),
                pl.BlockSpec((3, BC, 1), lambda p, j: (0, 0, 0)),
            ],
            out_specs=pl.BlockSpec((None, BC, LANES), lambda p, j: (p, 0, 0)),
        ),
        compiler_params=pltpu.CompilerParams(
            dimension_semantics=("parallel", "arbitrary"),
            vmem_limit_bytes=32 * 1024 * 1024,
        ),
    )(img2, noise2, w_bd, coefs)

    # tiny final reduction on the host side of the call:
    # sum over splits / channels / lanes, mean over (C, N), p2 weight, mean over B
    per_b = out.reshape(n_split, B, C, LANES).sum(axis=(0, 2, 3))        # (B,)
    per_b = per_b * (1.0 / float(C * N)) * p2w_t
    return per_b.mean()


# ----------------------------------------------------------------------------
# Pure-JAX reference (mirrors the PyTorch forward exactly, same stand-in model)
# ----------------------------------------------------------------------------
def reference_forward(img, t, noise, schedule, model_w, model_b, num_timesteps):
    B, C, N = img.shape
    x_start = img * 2.0 - 1.0
    sac = schedule["sqrt_alphas_cumprod"][t][:, None, None]
    som = schedule["sqrt_one_minus_alphas_cumprod"][t][:, None, None]
    x = sac * x_start + som * noise
    temb = (t.astype(jnp.float32) / float(num_timesteps))[:, None, None]
    y = jnp.einsum("oc,bcn->bon", model_w, x) + model_b[None, :, None] + temb
    err = jnp.abs(y - noise)                                  # l1, reduction='none'
    per_b = err.reshape(B, -1).mean(axis=1)                   # 'b ... -> b (...)' mean
    per_b = per_b * schedule["p2_loss_weight"][t]             # p2 loss weight
    return per_b.mean()


if __name__ == "__main__":
    B, C, N = 2, 8, 1024       # batch, channels, seq_length
    T = 100                    # timesteps

    schedule = build_schedule(T)

    # deterministic inputs / RNG draws (torch.randint / torch.randn_like analogues)
    key = jax.random.PRNGKey(0)
    kimg, kt, kn, kw, kb = jax.random.split(key, 5)
    img = jax.random.uniform(kimg, (B, C, N), jnp.float32)          # image-like in [0,1]
    t = jax.random.randint(kt, (B,), 0, T)
    noise = jax.random.normal(kn, (B, C, N), jnp.float32)

    # deterministic synthetic model weights (pointwise Conv1d stand-in)
    model_w = jax.random.normal(kw, (C, C), jnp.float32) / math.sqrt(C)
    model_b = jax.random.normal(kb, (C,), jnp.float32) * 0.01

    loss = gaussian_diffusion_1d_forward(img, t, noise, schedule,
                                         model_w, model_b, T)
    loss = jax.block_until_ready(loss)

    ref = reference_forward(img, t, noise, schedule, model_w, model_b, T)
    assert jnp.isfinite(loss), "non-finite loss"
    tol = 1e-4 * max(1.0, abs(float(ref)))
    assert abs(float(loss) - float(ref)) < tol, (float(loss), float(ref))

    print("KERNEL_OK")
</pallas_src>

<mosaic_0001>
module attributes {stable_mosaic.version = 11 : i64} {
  func.func @diffusion_loss_kernel(%arg0: i32, %arg1: i32, %arg2: memref<16x1024xf32, #tpu.memory_space<vmem>>, %arg3: memref<16x1024xf32, #tpu.memory_space<vmem>>, %arg4: memref<16x16xf32, #tpu.memory_space<vmem>>, %arg5: memref<3x16x1xf32, #tpu.memory_space<vmem>>, %arg6: memref<1x16x128xf32, #tpu.memory_space<vmem>>) attributes {dimension_semantics = [#tpu.dimension_semantics<parallel>, #tpu.dimension_semantics<arbitrary>], iteration_bounds = array<i64: 1, 1>, scalar_prefetch = 0 : i64, scratch_operands = 0 : i64, tpu.core_type = #tpu.core_type<tc>, window_params = [{transform_indices = @transform_0, window_bounds = array<i64: 16, 1024>}, {transform_indices = @transform_1, window_bounds = array<i64: 16, 1024>}, {pipeline_mode = #tpu.pipeline_mode<synchronous>, transform_indices = @transform_2, window_bounds = array<i64: 16, 16>}, {pipeline_mode = #tpu.pipeline_mode<synchronous>, transform_indices = @transform_3, window_bounds = array<i64: 3, 16, 1>}, {transform_indices = @transform_4, window_bounds = array<i64: 1, 16, 128>}]} {
    %c0_i32 = arith.constant 0 : i32
    %0 = arith.cmpi eq, %arg1, %c0_i32 : i32
    %1 = arith.extui %0 : i1 to i32
    %c0_i32_0 = arith.constant 0 : i32
    %2 = arith.cmpi ne, %1, %c0_i32_0 : i32
    scf.if %2 {
      %cst_21 = arith.constant 0.000000e+00 : f32
      %47 = vector.broadcast %cst_21 : f32 to vector<16x128xf32>
      %c0_22 = arith.constant 0 : index
      %c0_23 = arith.constant 0 : index
      %c0_24 = arith.constant 0 : index
      %48 = vector.load %arg6[%c0_22, %c0_23, %c0_24] : memref<1x16x128xf32, #tpu.memory_space<vmem>>, vector<1x16x128xf32>
      %49 = vector.shape_cast %48 : vector<1x16x128xf32> to vector<16x128xf32>
      %50 = vector.shape_cast %47 : vector<16x128xf32> to vector<1x16x128xf32>
      tpu.vector_store %arg6[%c0_22, %c0_23, %c0_24], %50 {strides = array<i32>} : memref<1x16x128xf32, #tpu.memory_space<vmem>>, vector<1x16x128xf32>,
    } else {
    }
    %c0 = arith.constant 0 : index
    %c0_1 = arith.constant 0 : index
    %3 = vector.load %arg2[%c0, %c0_1] : memref<16x1024xf32, #tpu.memory_space<vmem>>, vector<16x1024xf32>
    %c0_2 = arith.constant 0 : index
    %c0_3 = arith.constant 0 : index
    %4 = vector.load %arg3[%c0_2, %c0_3] : memref<16x1024xf32, #tpu.memory_space<vmem>>, vector<16x1024xf32>
    %c0_4 = arith.constant 0 : index
    %c0_5 = arith.constant 0 : index
    %c0_6 = arith.constant 0 : index
    %5 = vector.load %arg5[%c0_4, %c0_5, %c0_6] : memref<3x16x1xf32, #tpu.memory_space<vmem>>, vector<1x16x1xf32>
    %6 = vector.shape_cast %5 : vector<1x16x1xf32> to vector<16x1xf32>
    %c1 = arith.constant 1 : index
    %c0_7 = arith.constant 0 : index
    %c0_8 = arith.constant 0 : index
    %7 = vector.load %arg5[%c1, %c0_7, %c0_8] : memref<3x16x1xf32, #tpu.memory_space<vmem>>, vector<1x16x1xf32>
    %8 = vector.shape_cast %7 : vector<1x16x1xf32> to vector<16x1xf32>
    %c2 = arith.constant 2 : index
    %c0_9 = arith.constant 0 : index
    %c0_10 = arith.constant 0 : index
    %9 = vector.load %arg5[%c2, %c0_9, %c0_10] : memref<3x16x1xf32, #tpu.memory_space<vmem>>, vector<1x16x1xf32>
    %10 = vector.shape_cast %9 : vector<1x16x1xf32> to vector<16x1xf32>
    %cst = arith.constant 2.000000e+00 : f32
    %11 = vector.broadcast %cst : f32 to vector<16x1024xf32>
    %12 = arith.mulf %3, %11 : vector<16x1024xf32>
    %cst_11 = arith.constant 1.000000e+00 : f32
    %13 = vector.broadcast %cst_11 : f32 to vector<16x1024xf32>
    %14 = arith.subf %12, %13 : vector<16x1024xf32>
    %15 = vector.broadcast %6 : vector<16x1xf32> to vector<16x1024xf32>
    %16 = arith.mulf %15, %14 : vector<16x1024xf32>
    %17 = vector.broadcast %8 : vector<16x1xf32> to vector<16x1024xf32>
    %18 = arith.mulf %17, %4 : vector<16x1024xf32>
    %19 = arith.addf %16, %18 : vector<16x1024xf32>
    %c0_12 = arith.constant 0 : index
    %c0_13 = arith.constant 0 : index
    %20 = vector.load %arg4[%c0_12, %c0_13] : memref<16x16xf32, #tpu.memory_space<vmem>>, vector<16x16xf32>
    %cst_14 = arith.constant dense<0.000000e+00> : vector<16x1024xf32>
    %21 = tpu.matmul %20, %19, %cst_14 {dimension_numbers = #tpu.dot_dimension_numbers<[1], [0], [0], [1], [0, 0, 1, 1], [], []>} : vector<16x16xf32>, vector<16x1024xf32>, vector<16x1024xf32> -> vector<16x1024xf32>
    %22 = vector.broadcast %10 : vector<16x1xf32> to vector<16x1024xf32>
    %23 = arith.addf %21, %22 : vector<16x1024xf32>
    %24 = arith.subf %23, %4 : vector<16x1024xf32>
    %25 = math.absf %24 : vector<16x1024xf32>
    %26 = vector.extract_strided_slice %25 {offsets = [0, 0], sizes = [16, 128], strides = [1, 1]} : vector<16x1024xf32> to vector<16x128xf32>
    %27 = vector.extract_strided_slice %25 {offsets = [0, 128], sizes = [16, 128], strides = [1, 1]} : vector<16x1024xf32> to vector<16x128xf32>
    %28 = arith.addf %26, %27 : vector<16x128xf32>
    %29 = vector.extract_strided_slice %25 {offsets = [0, 256], sizes = [16, 128], strides = [1, 1]} : vector<16x1024xf32> to vector<16x128xf32>
    %30 = arith.addf %28, %29 : vector<16x128xf32>
    %31 = vector.extract_strided_slice %25 {offsets = [0, 384], sizes = [16, 128], strides = [1, 1]} : vector<16x1024xf32> to vector<16x128xf32>
    %32 = arith.addf %30, %31 : vector<16x128xf32>
    %33 = vector.extract_strided_slice %25 {offsets = [0, 512], sizes = [16, 128], strides = [1, 1]} : vector<16x1024xf32> to vector<16x128xf32>
    %34 = arith.addf %32, %33 : vector<16x128xf32>
    %35 = vector.extract_strided_slice %25 {offsets = [0, 640], sizes = [16, 128], strides = [1, 1]} : vector<16x1024xf32> to vector<16x128xf32>
    %36 = arith.addf %34, %35 : vector<16x128xf32>
    %37 = vector.extract_strided_slice %25 {offsets = [0, 768], sizes = [16, 128], strides = [1, 1]} : vector<16x1024xf32> to vector<16x128xf32>
    %38 = arith.addf %36, %37 : vector<16x128xf32>
    %39 = vector.extract_strided_slice %25 {offsets = [0, 896], sizes = [16, 128], strides = [1, 1]} : vector<16x1024xf32> to vector<16x128xf32>
    %40 = arith.addf %38, %39 : vector<16x128xf32>
    %c0_15 = arith.constant 0 : index
    %c0_16 = arith.constant 0 : index
    %c0_17 = arith.constant 0 : index
    %41 = vector.load %arg6[%c0_15, %c0_16, %c0_17] : memref<1x16x128xf32, #tpu.memory_space<vmem>>, vector<1x16x128xf32>
    %42 = vector.shape_cast %41 : vector<1x16x128xf32> to vector<16x128xf32>
    %43 = arith.addf %42, %40 : vector<16x128xf32>
    %c0_18 = arith.constant 0 : index
    %c0_19 = arith.constant 0 : index
    %c0_20 = arith.constant 0 : index
    %44 = vector.load %arg6[%c0_18, %c0_19, %c0_20] : memref<1x16x128xf32, #tpu.memory_space<vmem>>, vector<1x16x128xf32>
    %45 = vector.shape_cast %44 : vector<1x16x128xf32> to vector<16x128xf32>
    %46 = vector.shape_cast %43 : vector<16x128xf32> to vector<1x16x128xf32>
    tpu.vector_store %arg6[%c0_18, %c0_19, %c0_20], %46 {strides = array<i32>} : memref<1x16x128xf32, #tpu.memory_space<vmem>>, vector<1x16x128xf32>,
    return
  }
  func.func @transform_0(%arg0: i32, %arg1: i32) -> (i32, i32) {
    %c1_i32 = arith.constant 1 : i32
    %0 = arith.muli %arg0, %c1_i32 : i32
    %1 = arith.addi %0, %arg1 : i32
    %c0_i32 = arith.constant 0 : i32
    %c0_i32_0 = arith.constant 0 : i32
    return %c0_i32, %1 : i32, i32
  }
  func.func @transform_1(%arg0: i32, %arg1: i32) -> (i32, i32) {
    %c1_i32 = arith.constant 1 : i32
    %0 = arith.muli %arg0, %c1_i32 : i32
    %1 = arith.addi %0, %arg1 : i32
    %c0_i32 = arith.constant 0 : i32
    %c0_i32_0 = arith.constant 0 : i32
    return %c0_i32, %1 : i32, i32
  }
  func.func @transform_2(%arg0: i32, %arg1: i32) -> (i32, i32) {
    %c0_i32 = arith.constant 0 : i32
    %c0_i32_0 = arith.constant 0 : i32
    %c0_i32_1 = arith.constant 0 : i32
    return %c0_i32, %c0_i32_0 : i32, i32
  }
  func.func @transform_3(%arg0: i32, %arg1: i32) -> (i32, i32, i32) {
    %c0_i32 = arith.constant 0 : i32
    %c0_i32_0 = arith.constant 0 : i32
    %c0_i32_1 = arith.constant 0 : i32
    %c0_i32_2 = arith.constant 0 : i32
    return %c0_i32, %c0_i32_0, %c0_i32_1 : i32, i32, i32
  }
  func.func @transform_4(%arg0: i32, %arg1: i32) -> (i32, i32, i32) {
    %c0_i32 = arith.constant 0 : i32
    %c0_i32_0 = arith.constant 0 : i32
    %c0_i32_1 = arith.constant 0 : i32
    return %arg0, %c0_i32, %c0_i32_0 : i32, i32, i32
  }
}

</mosaic_0001>

<llo_original>
// kernel: tpu_custom_call.1
$region0: #{tpu_custom_call.1}
  #allocation0 [shape = 'u32[]', space=smem, size = 0x4, offset = 0x4, fixed_abs, tag = 'smem constant byte address 0x4 - core index']
  #allocation1 [shape = 'u32[144,128]{1,0:T(1,128)}', space=vmem, size = 0x12000, scoped, tag = 'internal scratch']
  %s0 = inlined_call_operand.hbm [shape: f32[16,1024], index: 0, kind: input, shape index: {}]
  %s1 = inlined_call_operand.hbm [shape: f32[16,1024], index: 1, kind: input, shape index: {}]
  %s2 = inlined_call_operand.vmem [shape: f32[16,16], index: 2, kind: input, shape index: {}]
  %s3 = inlined_call_operand.vmem [shape: f32[3,16,1], index: 3, kind: input, shape index: {}]
  %s4 = inlined_call_operand.hbm [shape: f32[1,16,128], index: 4, kind: output, shape index: {}]
  %s5 = sld [smem:[#allocation0]]
  $region38: #{tpu_custom_call.1} parent=0
    _
  %s7 = ssub.s32 1, %s5
  %s8 = scalar_select 0, %s7, %s5
  $region1: #{tpu_custom_call.1} parent=0
    #allocation2 [shape = 'u8[65536]{0}', space=vmem, size = 0x10000, scoped, tag = 'input window, operand 0, single buffered']
    #allocation3 [shape = 's32[1]{0}', space=sflag, size = 0x4, scoped, tag = 'scoped memory for tpu_custom_call.1']
    #allocation4 [shape = 's32[1]{0}', space=sflag, size = 0x4, scoped, tag = 'scoped memory for tpu_custom_call.1']
    #allocation5 [shape = 'u8[65536]{0}', space=vmem, size = 0x10000, scoped, tag = 'input window, operand 1, single buffered']
    #allocation6 [shape = 's32[1]{0}', space=sflag, size = 0x4, scoped, tag = 'scoped memory for tpu_custom_call.1']
    #allocation7 [shape = 'u8[8192]{0}', space=vmem, size = 0x2000, scoped, tag = 'output window, operand 0, single buffered']
    %9 = vsyncpa [#allocation3], 0
    %10 = vsyncpa [#allocation6], 0
    %11 = vsyncpa [#allocation4], 0
    // Predicated region
    $region2: #{tpu_custom_call.1} parent=1 // pred_check
      _
    $region3: #{tpu_custom_call.1} parent=1 // pred_check_branch
      %13 = sbr.rel (0) target = $region5
    $region4: #{tpu_custom_call.1} parent=1 // pred_region
      %s14 = sadd.s32 0, 0
      %s15 = smul.u32 8, %s14
      %s17 = ssub.s32 2048, 2048
      %18 = vsyncadd [#allocation3], %s17
      %s19 = smul.addr %s15, 128
      %s20 = scalar_lea.hbm %s0, %s19
      %s21 = sshll.u32 [#allocation2], 4
      %s22 = int_to_ptr.vmem [resolvable:$true] %s21
      %27 = dma.hbm_to_vmem [thread:$0]  %s20, 2048, %s22, [#allocation3], 1024, 1024, 64
    $region5: #{tpu_custom_call.1} parent=1 // pred_fallthru
      _
    // Predicated region
    $region6: #{tpu_custom_call.1} parent=1 // pred_check
      _
    $region7: #{tpu_custom_call.1} parent=1 // pred_check_branch
      %29 = sbr.rel (0) target = $region9
    $region8: #{tpu_custom_call.1} parent=1 // pred_region
      %s30 = sadd.s32 0, 0
      %s31 = smul.u32 8, %s30
      %s33 = ssub.s32 2048, 2048
      %34 = vsyncadd [#allocation6], %s33
      %s35 = smul.addr %s31, 128
      %s36 = scalar_lea.hbm %s1, %s35
      %s37 = sshll.u32 [#allocation5], 4
      %s38 = int_to_ptr.vmem [resolvable:$true] %s37
      %43 = dma.hbm_to_vmem [thread:$0]  %s36, 2048, %s38, [#allocation6], 1024, 1024, 64
    $region9: #{tpu_custom_call.1} parent=1 // pred_fallthru
      _
    // Predicated region
    $region10: #{tpu_custom_call.1} parent=1 // pred_check
      _
    $region11: #{tpu_custom_call.1} parent=1 // pred_check_branch
      %45 = sbr.rel (0) target = $region13
    $region12: #{tpu_custom_call.1} parent=1 // pred_region
      _
    $region13: #{tpu_custom_call.1} parent=1 // pred_fallthru
      _
    // Predicated region
    $region14: #{tpu_custom_call.1} parent=1 // pred_check
      _
    $region15: #{tpu_custom_call.1} parent=1 // pred_check_branch
      %47 = sbr.rel (0) target = $region17
    $region16: #{tpu_custom_call.1} parent=1 // pred_region
      _
    $region17: #{tpu_custom_call.1} parent=1 // pred_fallthru
      _
    // Predicated region
    $region18: #{tpu_custom_call.1} parent=1 // pred_check
      _
    $region19: #{tpu_custom_call.1} parent=1 // pred_check_branch
      %49 = sbr.rel (0) target = $region21
    $region20: #{tpu_custom_call.1} parent=1 // pred_region
      %50 = dma.done [#allocation3], 2048
    $region21: #{tpu_custom_call.1} parent=1 // pred_fallthru
      _
    // Predicated region
    $region22: #{tpu_custom_call.1} parent=1 // pred_check
      _
    $region23: #{tpu_custom_call.1} parent=1 // pred_check_branch
      %52 = sbr.rel (0) target = $region25
    $region24: #{tpu_custom_call.1} parent=1 // pred_region
      %53 = dma.done [#allocation6], 2048
    $region25: #{tpu_custom_call.1} parent=1 // pred_fallthru
      _
    %s54 = sadd.s32 0, 0
    %s55 = smul.u32 8, %s54
    %s56 = sadd.s32 0, 0
    %s57 = smul.u32 8, %s56
    %p58 = scmp.eq.s32.totalorder 0, 0
    // Predicated region
    $region26: #{tpu_custom_call.1} parent=1 // pred_check
      %p59 = pneg %p58
    $region27: #{tpu_custom_call.1} parent=1 // pred_check_branch
      %61 = sbr.rel (%p59) target = $region29
    $region28: #{tpu_custom_call.1} parent=1 // pred_region
      %62 = vst [vmem:[#allocation7] sm:$0xff] 0.0
      %63 = vst [vmem:[#allocation7 + $0x8] sm:$0xff] 0.0
    $region29: #{tpu_custom_call.1} parent=1 // pred_fallthru
      _
    %v64 = vld [vmem:[#allocation2] sm:$0xff]
    %v65 = vld [vmem:[#allocation2 + $0x8] sm:$0xff]
    %v66 = vld [vmem:[#allocation2 + $0x10] sm:$0xff]
    %v67 = vld [vmem:[#allocation2 + $0x18] sm:$0xff]
    %v68 = vld [vmem:[#allocation2 + $0x20] sm:$0xff]
    %v69 = vld [vmem:[#allocation2 + $0x28] sm:$0xff]
    %v70 = vld [vmem:[#allocation2 + $0x30] sm:$0xff]
    %v71 = vld [vmem:[#allocation2 + $0x38] sm:$0xff]
    %v72 = vld [vmem:[#allocation2 + $0x40] sm:$0xff]
    %v73 = vld [vmem:[#allocation2 + $0x48] sm:$0xff]
    %v74 = vld [vmem:[#allocation2 + $0x50] sm:$0xff]
    %v75 = vld [vmem:[#allocation2 + $0x58] sm:$0xff]
    %v76 = vld [vmem:[#allocation2 + $0x60] sm:$0xff]
    %v77 = vld [vmem:[#allocation2 + $0x68] sm:$0xff]
    %v78 = vld [vmem:[#allocation2 + $0x70] sm:$0xff]
    %v79 = vld [vmem:[#allocation2 + $0x78] sm:$0xff]
    %v80 = vld [vmem:[#allocation5] sm:$0xff]
    %v81 = vld [vmem:[#allocation5 + $0x8] sm:$0xff]
    %v82 = vld [vmem:[#allocation5 + $0x10] sm:$0xff]
    %v83 = vld [vmem:[#allocation5 + $0x18] sm:$0xff]
    %v84 = vld [vmem:[#allocation5 + $0x20] sm:$0xff]
    %v85 = vld [vmem:[#allocation5 + $0x28] sm:$0xff]
    %v86 = vld [vmem:[#allocation5 + $0x30] sm:$0xff]
    %v87 = vld [vmem:[#allocation5 + $0x38] sm:$0xff]
    %v88 = vld [vmem:[#allocation5 + $0x40] sm:$0xff]
    %v89 = vld [vmem:[#allocation5 + $0x48] sm:$0xff]
    %v90 = vld [vmem:[#allocation5 + $0x50] sm:$0xff]
    %v91 = vld [vmem:[#allocation5 + $0x58] sm:$0xff]
    %v92 = vld [vmem:[#allocation5 + $0x60] sm:$0xff]
    %v93 = vld [vmem:[#allocation5 + $0x68] sm:$0xff]
    %v94 = vld [vmem:[#allocation5 + $0x70] sm:$0xff]
    %v95 = vld [vmem:[#allocation5 + $0x78] sm:$0xff]
    %v96 = vld [vmem:[%s3] sm:$0xff]
    %v97 = vld [vmem:[%s3 + $0x8] sm:$0xff]
    %s98 = scalar_lea.vmem %s3, 16
    %v99 = vld [vmem:[%s98] sm:$0xff]
    %v100 = vld [vmem:[%s98 + $0x8] sm:$0xff]
    %s101 = scalar_lea.vmem %s3, 32
    %v102 = vld [vmem:[%s101] sm:$0xff]
    %v103 = vld [vmem:[%s101 + $0x8] sm:$0xff]
    %v104 = vmul.f32 %v64, 2.0
    %v105 = vmul.f32 %v65, 2.0
    %v106 = vmul.f32 %v66, 2.0
    %v107 = vmul.f32 %v67, 2.0
    %v108 = vmul.f32 %v68, 2.0
    %v109 = vmul.f32 %v69, 2.0
    %v110 = vmul.f32 %v70, 2.0
    %v111 = vmul.f32 %v71, 2.0
    %v112 = vmul.f32 %v72, 2.0
    %v113 = vmul.f32 %v73, 2.0
    %v114 = vmul.f32 %v74, 2.0
    %v115 = vmul.f32 %v75, 2.0
    %v116 = vmul.f32 %v76, 2.0
    %v117 = vmul.f32 %v77, 2.0
    %v118 = vmul.f32 %v78, 2.0
    %v119 = vmul.f32 %v79, 2.0
    %v120 = vsub.f32 %v104, 1.0
    %v121 = vsub.f32 %v105, 1.0
    %v122 = vsub.f32 %v106, 1.0
    %v123 = vsub.f32 %v107, 1.0
    %v124 = vsub.f32 %v108, 1.0
    %v125 = vsub.f32 %v109, 1.0
    %v126 = vsub.f32 %v110, 1.0
    %v127 = vsub.f32 %v111, 1.0
    %v128 = vsub.f32 %v112, 1.0
    %v129 = vsub.f32 %v113, 1.0
    %v130 = vsub.f32 %v114, 1.0
    %v131 = vsub.f32 %v115, 1.0
    %v132 = vsub.f32 %v116, 1.0
    %v133 = vsub.f32 %v117, 1.0
    %v134 = vsub.f32 %v118, 1.0
    %v135 = vsub.f32 %v119, 1.0
    %137 = vset.pattern.permute.xlu0 0
    %138 = vperm.xlu0 %137, %v96
    %v139 = vpop.permute.xlu0 %138
    %142 = vset.pattern.permute.xlu0 0
    %143 = vperm.xlu0 %142, %v97
    %v144 = vpop.permute.xlu0 %143
    %v146 = vmul.f32 %v139, %v120
    %v147 = vmul.f32 %v139, %v121
    %v148 = vmul.f32 %v139, %v122
    %v149 = vmul.f32 %v139, %v123
    %v150 = vmul.f32 %v139, %v124
    %v151 = vmul.f32 %v139, %v125
    %v152 = vmul.f32 %v139, %v126
    %v153 = vmul.f32 %v139, %v127
    %v154 = vmul.f32 %v144, %v128
    %v155 = vmul.f32 %v144, %v129
    %v156 = vmul.f32 %v144, %v130
    %v157 = vmul.f32 %v144, %v131
    %v158 = vmul.f32 %v144, %v132
    %v159 = vmul.f32 %v144, %v133
    %v160 = vmul.f32 %v144, %v134
    %v161 = vmul.f32 %v144, %v135
    %163 = vset.pattern.permute.xlu0 0
    %164 = vperm.xlu0 %163, %v99
    %v165 = vpop.permute.xlu0 %164
    %168 = vset.pattern.permute.xlu0 0
    %169 = vperm.xlu0 %168, %v100
    %v170 = vpop.permute.xlu0 %169
    %v172 = vmul.f32 %v165, %v80
    %v173 = vmul.f32 %v165, %v81
    %v174 = vmul.f32 %v165, %v82
    %v175 = vmul.f32 %v165, %v83
    %v176 = vmul.f32 %v165, %v84
    %v177 = vmul.f32 %v165, %v85
    %v178 = vmul.f32 %v165, %v86
    %v179 = vmul.f32 %v165, %v87
    %v180 = vmul.f32 %v170, %v88
    %v181 = vmul.f32 %v170, %v89
    %v182 = vmul.f32 %v170, %v90
    %v183 = vmul.f32 %v170, %v91
    %v184 = vmul.f32 %v170, %v92
    %v185 = vmul.f32 %v170, %v93
    %v186 = vmul.f32 %v170, %v94
    %v187 = vmul.f32 %v170, %v95
    %v188 = vadd.f32 %v146, %v172
    %v189 = vadd.f32 %v147, %v173
    %v190 = vadd.f32 %v148, %v174
    %v191 = vadd.f32 %v149, %v175
    %v192 = vadd.f32 %v150, %v176
    %v193 = vadd.f32 %v151, %v177
    %v194 = vadd.f32 %v152, %v178
    %v195 = vadd.f32 %v153, %v179
    %v196 = vadd.f32 %v154, %v180
    %v197 = vadd.f32 %v155, %v181
    %v198 = vadd.f32 %v156, %v182
    %v199 = vadd.f32 %v157, %v183
    %v200 = vadd.f32 %v158, %v184
    %v201 = vadd.f32 %v159, %v185
    %v202 = vadd.f32 %v160, %v186
    %v203 = vadd.f32 %v161, %v187
    %v204 = vld [vmem:[%s2] sm:$0xff]
    %v205 = vld [vmem:[%s2 + $0x8] sm:$0xff]
    %207 = vset.pattern.permute.xlu0 0
    %208 = vperm.xlu0 %207, %v102
    %v209 = vpop.permute.xlu0 %208
    %212 = vset.pattern.permute.xlu0 0
    %213 = vperm.xlu0 %212, %v103
    %v214 = vpop.permute.xlu0 %213
    %vm216 = vcmask 130048
    %v218 = vsel %vm216, %v204, 0
    %v221 = vsel %vm216, %v205, 0
    %223 = vmatprep.subr.mxu0 %v189
    %224 = vmatpush1.msra.mxu0 %v188
    %225 = vmatprep.subr.mxu0 %v197
    %226 = vmatpush1.msra.mxu0 %v196
    %227 = vmatprep.subr.mxu0 0.0
    %228 = vmatpush1.msra.mxu0 0.0
    %229 = vmatprep.subr.mxu0 0.0
    %230 = vmatpush1.msra.mxu0 0.0
    %231 = vmatprep.subr.mxu0 0.0
    %232 = vmatpush1.msra.mxu0 0.0
    %233 = vmatprep.subr.mxu0 0.0
    %234 = vmatpush1.msra.mxu0 0.0
    %235 = vmatprep.subr.mxu0 0.0
    %236 = vmatpush1.msra.mxu0 0.0
    %237 = vmatprep.subr.mxu0 0.0
    %238 = vmatpush1.msra.mxu0 0.0
    %239 = vmatprep.subr.mxu0 0.0
    %240 = vmatpush1.msra.mxu0 0.0
    %241 = vmatprep.subr.mxu0 0.0
    %242 = vmatpush1.msra.mxu0 0.0
    %243 = vmatprep.subr.mxu0 0.0
    %244 = vmatpush1.msra.mxu0 0.0
    %245 = vmatprep.subr.mxu0 0.0
    %246 = vmatpush1.msra.mxu0 0.0
    %247 = vmatprep.subr.mxu0 0.0
    %248 = vmatpush1.msra.mxu0 0.0
    %249 = vmatprep.subr.mxu0 0.0
    %250 = vmatpush1.msra.mxu0 0.0
    %251 = vmatprep.subr.mxu0 0.0
    %252 = vmatpush1.msra.mxu0 0.0
    %253 = vmatprep.subr.mxu0 0.0
    %254 = vmatpush1.msra.mxu0 0.0
    %255 = vmatprep.subr.mxu0 0.0
    %256 = vmatpush1.msra.mxu0 0.0
    %257 = vmatprep.subr.mxu0 0.0
    %258 = vmatpush1.msra.mxu0 0.0
    %259 = vmatprep.subr.mxu0 0.0
    %260 = vmatpush1.msra.mxu0 0.0
    %261 = vmatprep.subr.mxu0 0.0
    %262 = vmatpush1.msra.mxu0 0.0
    %263 = vmatprep.subr.mxu0 0.0
    %264 = vmatpush1.msra.mxu0 0.0
    %265 = vmatprep.subr.mxu0 0.0
    %266 = vmatpush1.msra.mxu0 0.0
    %267 = vmatprep.subr.mxu0 0.0
    %268 = vmatpush1.msra.mxu0 0.0
    %269 = vmatprep.subr.mxu0 0.0
    %270 = vmatpush1.msra.mxu0 0.0
    %271 = vmatprep.subr.mxu0 0.0
    %272 = vmatpush1.msra.mxu0 0.0
    %273 = vmatprep.subr.mxu0 0.0
    %274 = vmatpush1.msra.mxu0 0.0
    %275 = vmatprep.subr.mxu0 0.0
    %276 = vmatpush1.msra.mxu0 0.0
    %277 = vmatprep.subr.mxu0 0.0
    %278 = vmatpush1.msra.mxu0 0.0
    %279 = vmatprep.subr.mxu0 0.0
    %280 = vmatpush1.msra.mxu0 0.0
    %281 = vmatprep.subr.mxu0 0.0
    %282 = vmatpush1.msra.mxu0 0.0
    %283 = vmatprep.subr.mxu0 0.0
    %284 = vmatpush1.msra.mxu0 0.0
    %285 = vmatprep.subr.mxu0 0.0
    %286 = vmatpush1.msra.mxu0 0.0
    %287 = vmatprep.mubr.f32.mxu0 0.0
    %288 = vmatmul.mubr.f32.gmra.mrb[0].mxu0 %v218
    %v289 = vpop.f32.mrb[0].mxu0
    %v290 = vadd.f32 %v209, %v289
    %v291 = vpop.f32.mrb[0].mxu0
    %v292 = vadd.f32 %v209, %v291
    %293 = vmatprep.mubr.f32.mxu0 0.0
    %294 = vmatmul.mubr.f32.gmra.mrb[0].mxu0 %v221
    %v295 = vpop.f32.mrb[0].mxu0
    %v296 = vadd.f32 %v214, %v295
    %v297 = vpop.f32.mrb[0].mxu0
    %v298 = vadd.f32 %v214, %v297
    %299 = vdwg.mxu0
    %300 = vmatprep.subr.mxu0 %v191
    %301 = vmatpush1.msra.mxu0 %v190
    %302 = vmatprep.subr.mxu0 %v199
    %303 = vmatpush1.msra.mxu0 %v198
    %304 = vmatprep.subr.mxu0 0.0
    %305 = vmatpush1.msra.mxu0 0.0
    %306 = vmatprep.subr.mxu0 0.0
    %307 = vmatpush1.msra.mxu0 0.0
    %308 = vmatprep.subr.mxu0 0.0
    %309 = vmatpush1.msra.mxu0 0.0
    %310 = vmatprep.subr.mxu0 0.0
    %311 = vmatpush1.msra.mxu0 0.0
    %312 = vmatprep.subr.mxu0 0.0
    %313 = vmatpush1.msra.mxu0 0.0
    %314 = vmatprep.subr.mxu0 0.0
    %315 = vmatpush1.msra.mxu0 0.0
    %316 = vmatprep.subr.mxu0 0.0
    %317 = vmatpush1.msra.mxu0 0.0
    %318 = vmatprep.subr.mxu0 0.0
    %319 = vmatpush1.msra.mxu0 0.0
    %320 = vmatprep.subr.mxu0 0.0
    %321 = vmatpush1.msra.mxu0 0.0
    %322 = vmatprep.subr.mxu0 0.0
    %323 = vmatpush1.msra.mxu0 0.0
    %324 = vmatprep.subr.mxu0 0.0
    %325 = vmatpush1.msra.mxu0 0.0
    %326 = vmatprep.subr.mxu0 0.0
    %327 = vmatpush1.msra.mxu0 0.0
    %328 = vmatprep.subr.mxu0 0.0
    %329 = vmatpush1.msra.mxu0 0.0
    %330 = vmatprep.subr.mxu0 0.0
    %331 = vmatpush1.msra.mxu0 0.0
    %332 = vmatprep.subr.mxu0 0.0
    %333 = vmatpush1.msra.mxu0 0.0
    %334 = vmatprep.subr.mxu0 0.0
    %335 = vmatpush1.msra.mxu0 0.0
    %336 = vmatprep.subr.mxu0 0.0
    %337 = vmatpush1.msra.mxu0 0.0
    %338 = vmatprep.subr.mxu0 0.0
    %339 = vmatpush1.msra.mxu0 0.0
    %340 = vmatprep.subr.mxu0 0.0
    %341 = vmatpush1.msra.mxu0 0.0
    %342 = vmatprep.subr.mxu0 0.0
    %343 = vmatpush1.msra.mxu0 0.0
    %344 = vmatprep.subr.mxu0 0.0
    %345 = vmatpush1.msra.mxu0 0.0
    %346 = vmatprep.subr.mxu0 0.0
    %347 = vmatpush1.msra.mxu0 0.0
    %348 = vmatprep.subr.mxu0 0.0
    %349 = vmatpush1.msra.mxu0 0.0
    %350 = vmatprep.subr.mxu0 0.0
    %351 = vmatpush1.msra.mxu0 0.0
    %352 = vmatprep.subr.mxu0 0.0
    %353 = vmatpush1.msra.mxu0 0.0
    %354 = vmatprep.subr.mxu0 0.0
    %355 = vmatpush1.msra.mxu0 0.0
    %356 = vmatprep.subr.mxu0 0.0
    %357 = vmatpush1.msra.mxu0 0.0
    %358 = vmatprep.subr.mxu0 0.0
    %359 = vmatpush1.msra.mxu0 0.0
    %360 = vmatprep.subr.mxu0 0.0
    %361 = vmatpush1.msra.mxu0 0.0
    %362 = vmatprep.subr.mxu0 0.0
    %363 = vmatpush1.msra.mxu0 0.0
    %364 = vmatprep.mubr.f32.mxu0 0.0
    %365 = vmatmul.mubr.f32.gmra.mrb[0].mxu0 %v218
    %v366 = vpop.f32.mrb[0].mxu0
    %v367 = vadd.f32 %v209, %v366
    %v368 = vpop.f32.mrb[0].mxu0
    %v369 = vadd.f32 %v209, %v368
    %370 = vmatprep.mubr.f32.mxu0 0.0
    %371 = vmatmul.mubr.f32.gmra.mrb[0].mxu0 %v221
    %v372 = vpop.f32.mrb[0].mxu0
    %v373 = vadd.f32 %v214, %v372
    %v374 = vpop.f32.mrb[0].mxu0
    %v375 = vadd.f32 %v214, %v374
    %376 = vdwg.mxu0
    %377 = vmatprep.subr.mxu0 %v193
    %378 = vmatpush1.msra.mxu0 %v192
    %379 = vmatprep.subr.mxu0 %v201
    %380 = vmatpush1.msra.mxu0 %v200
    %381 = vmatprep.subr.mxu0 0.0
    %382 = vmatpush1.msra.mxu0 0.0
    %383 = vmatprep.subr.mxu0 0.0
    %384 = vmatpush1.msra.mxu0 0.0
    %385 = vmatprep.subr.mxu0 0.0
    %386 = vmatpush1.msra.mxu0 0.0
    %387 = vmatprep.subr.mxu0 0.0
    %388 = vmatpush1.msra.mxu0 0.0
    %389 = vmatprep.subr.mxu0 0.0
    %390 = vmatpush1.msra.mxu0 0.0
    %391 = vmatprep.subr.mxu0 0.0
    %392 = vmatpush1.msra.mxu0 0.0
    %393 = vmatprep.subr.mxu0 0.0
    %394 = vmatpush1.msra.mxu0 0.0
    %395 = vmatprep.subr.mxu0 0.0
    %396 = vmatpush1.msra.mxu0 0.0
    %397 = vmatprep.subr.mxu0 0.0
    %398 = vmatpush1.msra.mxu0 0.0
    %399 = vmatprep.subr.mxu0 0.0
    %400 = vmatpush1.msra.mxu0 0.0
    %401 = vmatprep.subr.mxu0 0.0
    %402 = vmatpush1.msra.mxu0 0.0
    %403 = vmatprep.subr.mxu0 0.0
    %404 = vmatpush1.msra.mxu0 0.0
    %405 = vmatprep.subr.mxu0 0.0
    %406 = vmatpush1.msra.mxu0 0.0
    %407 = vmatprep.subr.mxu0 0.0
    %408 = vmatpush1.msra.mxu0 0.0
    %409 = vmatprep.subr.mxu0 0.0
    %410 = vmatpush1.msra.mxu0 0.0
    %411 = vmatprep.subr.mxu0 0.0
    %412 = vmatpush1.msra.mxu0 0.0
    %413 = vmatprep.subr.mxu0 0.0
    %414 = vmatpush1.msra.mxu0 0.0
    %415 = vmatprep.subr.mxu0 0.0
    %416 = vmatpush1.msra.mxu0 0.0
    %417 = vmatprep.subr.mxu0 0.0
    %418 = vmatpush1.msra.mxu0 0.0
    %419 = vmatprep.subr.mxu0 0.0
    %420 = vmatpush1.msra.mxu0 0.0
    %421 = vmatprep.subr.mxu0 0.0
    %422 = vmatpush1.msra.mxu0 0.0
    %423 = vmatprep.subr.mxu0 0.0
    %424 = vmatpush1.msra.mxu0 0.0
    %425 = vmatprep.subr.mxu0 0.0
    %426 = vmatpush1.msra.mxu0 0.0
    %427 = vmatprep.subr.mxu0 0.0
    %428 = vmatpush1.msra.mxu0 0.0
    %429 = vmatprep.subr.mxu0 0.0
    %430 = vmatpush1.msra.mxu0 0.0
    %431 = vmatprep.subr.mxu0 0.0
    %432 = vmatpush1.msra.mxu0 0.0
    %433 = vmatprep.subr.mxu0 0.0
    %434 = vmatpush1.msra.mxu0 0.0
    %435 = vmatprep.subr.mxu0 0.0
    %436 = vmatpush1.msra.mxu0 0.0
    %437 = vmatprep.subr.mxu0 0.0
    %438 = vmatpush1.msra.mxu0 0.0
    %439 = vmatprep.subr.mxu0 0.0
    %440 = vmatpush1.msra.mxu0 0.0
    %441 = vmatprep.mubr.f32.mxu0 0.0
    %442 = vmatmul.mubr.f32.gmra.mrb[0].mxu0 %v218
    %v443 = vpop.f32.mrb[0].mxu0
    %v444 = vadd.f32 %v209, %v443
    %v445 = vpop.f32.mrb[0].mxu0
    %v446 = vadd.f32 %v209, %v445
    %447 = vmatprep.mubr.f32.mxu0 0.0
    %448 = vmatmul.mubr.f32.gmra.mrb[0].mxu0 %v221
    %v449 = vpop.f32.mrb[0].mxu0
    %v450 = vadd.f32 %v214, %v449
    %v451 = vpop.f32.mrb[0].mxu0
    %v452 = vadd.f32 %v214, %v451
    %453 = vdwg.mxu0
    %454 = vmatprep.subr.mxu0 %v195
    %455 = vmatpush1.msra.mxu0 %v194
    %456 = vmatprep.subr.mxu0 %v203
    %457 = vmatpush1.msra.mxu0 %v202
    %458 = vmatprep.subr.mxu0 0.0
    %459 = vmatpush1.msra.mxu0 0.0
    %460 = vmatprep.subr.mxu0 0.0
    %461 = vmatpush1.msra.mxu0 0.0
    %462 = vmatprep.subr.mxu0 0.0
    %463 = vmatpush1.msra.mxu0 0.0
    %464 = vmatprep.subr.mxu0 0.0
    %465 = vmatpush1.msra.mxu0 0.0
    %466 = vmatprep.subr.mxu0 0.0
    %467 = vmatpush1.msra.mxu0 0.0
    %468 = vmatprep.subr.mxu0 0.0
    %469 = vmatpush1.msra.mxu0 0.0
    %470 = vmatprep.subr.mxu0 0.0
    %471 = vmatpush1.msra.mxu0 0.0
    %472 = vmatprep.subr.mxu0 0.0
    %473 = vmatpush1.msra.mxu0 0.0
    %474 = vmatprep.subr.mxu0 0.0
    %475 = vmatpush1.msra.mxu0 0.0
    %476 = vmatprep.subr.mxu0 0.0
    %477 = vmatpush1.msra.mxu0 0.0
    %478 = vmatprep.subr.mxu0 0.0
    %479 = vmatpush1.msra.mxu0 0.0
    %480 = vmatprep.subr.mxu0 0.0
    %481 = vmatpush1.msra.mxu0 0.0
    %482 = vmatprep.subr.mxu0 0.0
    %483 = vmatpush1.msra.mxu0 0.0
    %484 = vmatprep.subr.mxu0 0.0
    %485 = vmatpush1.msra.mxu0 0.0
    %486 = vmatprep.subr.mxu0 0.0
    %487 = vmatpush1.msra.mxu0 0.0
    %488 = vmatprep.subr.mxu0 0.0
    %489 = vmatpush1.msra.mxu0 0.0
    %490 = vmatprep.subr.mxu0 0.0
    %491 = vmatpush1.msra.mxu0 0.0
    %492 = vmatprep.subr.mxu0 0.0
    %493 = vmatpush1.msra.mxu0 0.0
    %494 = vmatprep.subr.mxu0 0.0
    %495 = vmatpush1.msra.mxu0 0.0
    %496 = vmatprep.subr.mxu0 0.0
    %497 = vmatpush1.msra.mxu0 0.0
    %498 = vmatprep.subr.mxu0 0.0
    %499 = vmatpush1.msra.mxu0 0.0
    %500 = vmatprep.subr.mxu0 0.0
    %501 = vmatpush1.msra.mxu0 0.0
    %502 = vmatprep.subr.mxu0 0.0
    %503 = vmatpush1.msra.mxu0 0.0
    %504 = vmatprep.subr.mxu0 0.0
    %505 = vmatpush1.msra.mxu0 0.0
    %506 = vmatprep.subr.mxu0 0.0
    %507 = vmatpush1.msra.mxu0 0.0
    %508 = vmatprep.subr.mxu0 0.0
    %509 = vmatpush1.msra.mxu0 0.0
    %510 = vmatprep.subr.mxu0 0.0
    %511 = vmatpush1.msra.mxu0 0.0
    %512 = vmatprep.subr.mxu0 0.0
    %513 = vmatpush1.msra.mxu0 0.0
    %514 = vmatprep.subr.mxu0 0.0
    %515 = vmatpush1.msra.mxu0 0.0
    %516 = vmatprep.subr.mxu0 0.0
    %517 = vmatpush1.msra.mxu0 0.0
    %518 = vmatprep.mubr.f32.mxu0 0.0
    %519 = vmatmul.mubr.f32.gmra.mrb[0].mxu0 %v218
    %v520 = vpop.f32.mrb[0].mxu0
    %v521 = vadd.f32 %v209, %v520
    %v522 = vpop.f32.mrb[0].mxu0
    %v523 = vadd.f32 %v209, %v522
    %524 = vmatprep.mubr.f32.mxu0 0.0
    %525 = vmatmul.mubr.f32.gmra.mrb[0].mxu0 %v221
    %v526 = vpop.f32.mrb[0].mxu0
    %v527 = vadd.f32 %v214, %v526
    %v528 = vpop.f32.mrb[0].mxu0
    %v529 = vadd.f32 %v214, %v528
    %530 = vdwg.mxu0
    %v531 = vsub.f32 %v290, %v80
    %v532 = vsub.f32 %v292, %v81
    %v533 = vsub.f32 %v367, %v82
    %v534 = vsub.f32 %v369, %v83
    %v535 = vsub.f32 %v444, %v84
    %v536 = vsub.f32 %v446, %v85
    %v537 = vsub.f32 %v521, %v86
    %v538 = vsub.f32 %v523, %v87
    %v539 = vsub.f32 %v296, %v88
    %v540 = vsub.f32 %v298, %v89
    %v541 = vsub.f32 %v373, %v90
    %v542 = vsub.f32 %v375, %v91
    %v543 = vsub.f32 %v450, %v92
    %v544 = vsub.f32 %v452, %v93
    %v545 = vsub.f32 %v527, %v94
    %v546 = vsub.f32 %v529, %v95
    %v547 = vand.u32 2147483647, %v531
    %v548 = vand.u32 2147483647, %v532
    %v549 = vand.u32 2147483647, %v533
    %v550 = vand.u32 2147483647, %v534
    %v551 = vand.u32 2147483647, %v535
    %v552 = vand.u32 2147483647, %v536
    %v553 = vand.u32 2147483647, %v537
    %v554 = vand.u32 2147483647, %v538
    %v555 = vand.u32 2147483647, %v539
    %v556 = vand.u32 2147483647, %v540
    %v557 = vand.u32 2147483647, %v541
    %v558 = vand.u32 2147483647, %v542
    %v559 = vand.u32 2147483647, %v543
    %v560 = vand.u32 2147483647, %v544
    %v561 = vand.u32 2147483647, %v545
    %v562 = vand.u32 2147483647, %v546
    %v563 = vadd.f32 %v547, %v548
    %v564 = vadd.f32 %v555, %v556
    %v565 = vadd.f32 %v563, %v549
    %v566 = vadd.f32 %v564, %v557
    %v567 = vadd.f32 %v565, %v550
    %v568 = vadd.f32 %v566, %v558
    %v569 = vadd.f32 %v567, %v551
    %v570 = vadd.f32 %v568, %v559
    %v571 = vadd.f32 %v569, %v552
    %v572 = vadd.f32 %v570, %v560
    %v573 = vadd.f32 %v571, %v553
    %v574 = vadd.f32 %v572, %v561
    %v575 = vadd.f32 %v573, %v554
    %v576 = vadd.f32 %v574, %v562
    %v577 = vld [vmem:[#allocation7] sm:$0xff]
    %v578 = vld [vmem:[#allocation7 + $0x8] sm:$0xff]
    %v579 = vadd.f32 %v577, %v575
    %v580 = vadd.f32 %v578, %v576
    %581 = vst [vmem:[#allocation7] sm:$0xff] %v579
    %582 = vst [vmem:[#allocation7 + $0x8] sm:$0xff] %v580
    // Predicated region
    $region30: #{tpu_custom_call.1} parent=1 // pred_check
      _
    $region31: #{tpu_custom_call.1} parent=1 // pred_check_branch
      %584 = sbr.rel (0) target = $region33
    $region32: #{tpu_custom_call.1} parent=1 // pred_region
      %s586 = ssub.s32 256, 256
      %587 = vsyncadd [#allocation4], %s586
      %s588 = sshll.u32 [#allocation7], 4
      %s589 = int_to_ptr.vmem [resolvable:$true] %s588
      %594 = dma.vmem_to_hbm [thread:$0]  %s589, 256, %s4, [#allocation4], 128, 128, 8
    $region33: #{tpu_custom_call.1} parent=1 // pred_fallthru
      _
    // Predicated region
    $region34: #{tpu_custom_call.1} parent=1 // pred_check
      _
    $region35: #{tpu_custom_call.1} parent=1 // pred_check_branch
      %596 = sbr.rel (0) target = $region37
    $region36: #{tpu_custom_call.1} parent=1 // pred_region
      %597 = dma.done [#allocation4], 256
    $region37: #{tpu_custom_call.1} parent=1 // pred_fallthru
      _
    %598 = vsyncpa [#allocation3], 1
    %599 = vsyncpa [#allocation6], 1
    %600 = vsyncpa [#allocation4], 1

</llo_original>
